<compile_context>
chip_gen: v7x
topology: tpu7x:2x2x1
jax: 0.10.0
libtpu: 0.0.40
codegen_flags: <defaults>
</compile_context>

<pallas_src>
import jax
import jax.numpy as jnp
from jax.experimental import pallas as pl
from jax.experimental.pallas import tpu as pltpu  # noqa: F401  (TPU-specific tuning hooks)


def att_kernel(x_ref, edges_ref, wt_ref, w_ref, b_ref, out_ref):
    # x_ref: (B, F)   edges_ref: (S, B, F)   wt_ref: (F, F) == W^T   w_ref: (F, F) == W
    # b_ref: (1, F)   out_ref: (S, B, F)
    x = x_ref[...]
    edges = edges_ref[...]
    wt = wt_ref[...]
    w_mat = w_ref[...]
    bias = b_ref[...]

    # m_i = Linear(temporal): identical for every edge in the PyTorch loop -> compute once.
    m_i = jnp.dot(x, wt, preferred_element_type=jnp.float32) + bias        # (B, F)

    # Algebraic fold: e[s,b] = edges[s,b] . u[b] + c[b]   (m_j never materialized)
    u = jnp.dot(m_i, w_mat, preferred_element_type=jnp.float32)            # (B, F) = m_i @ W
    c = jnp.sum(m_i * bias, axis=-1, keepdims=True)                        # (B, 1)

    # Scores for all S edges at once (VPU mul + XLU lane reduce), kept in vregs.
    e = jnp.sum(edges * u[None, :, :], axis=-1, keepdims=True) + c[None]   # (S, B, 1)

    # Normalize by the plain signed sum over edges (matches the module; NOT a softmax).
    e_sum = jnp.sum(e, axis=0, keepdims=True)                              # (1, B, 1)
    w_att = e * pl.reciprocal(e_sum, approx=False)                         # (S, B, 1)

    # Weighting phase: per-edge scalar broadcast over F lanes, single bulk store.
    out_ref[...] = (w_att * edges).astype(out_ref.dtype)


def att_layer(temporal_edge_feature, edge_stack, W, b):
    """temporal_edge_feature: (B, F); edge_stack: (S, B, F); W: (F_out, F_in) torch-style; b: (F,)."""
    S, B, F = edge_stack.shape
    wt = jnp.transpose(W)          # (F_in, F_out): x @ wt == nn.Linear weight application
    b2 = b.reshape(1, F)
    return pl.pallas_call(
        att_kernel,
        grid=(1,),
        out_shape=jax.ShapeDtypeStruct((S, B, F), edge_stack.dtype),
        in_specs=[
            pl.BlockSpec((B, F), lambda i: (0, 0)),
            pl.BlockSpec((S, B, F), lambda i: (0, 0, 0)),
            pl.BlockSpec((F, F), lambda i: (0, 0)),
            pl.BlockSpec((F, F), lambda i: (0, 0)),
            pl.BlockSpec((1, F), lambda i: (0, 0)),
        ],
        out_specs=pl.BlockSpec((S, B, F), lambda i: (0, 0, 0)),
    )(temporal_edge_feature, edge_stack, wt, W, b2)


if __name__ == "__main__":
    # Small shapes implied by the forward: batch B, edge_feature_size F, S spatial edges.
    B, F, S = 2, 32, 8

    key = jax.random.PRNGKey(0)
    k1, k2, k3, k4 = jax.random.split(key, 4)
    temporal = jax.random.normal(k1, (B, F), dtype=jnp.float32)
    edges = jax.random.normal(k2, (S, B, F), dtype=jnp.float32)      # stacked edge_feature_s_list
    # Deterministic synthetic Linear(F, F) parameters (torch convention: W is (out, in)).
    W = jax.random.normal(k3, (F, F), dtype=jnp.float32) * (1.0 / jnp.sqrt(F))
    b = jax.random.normal(k4, (F,), dtype=jnp.float32) * 0.1

    out = att_layer(temporal, edges, W, b)
    out = jax.block_until_ready(out)

    # Pure-JAX reference of the PyTorch forward (sanity check).
    m_i = temporal @ W.T + b                                          # (B, F)
    m_j = edges @ W.T + b                                             # (S, B, F)
    e = jnp.sum(m_i[None] * m_j, axis=-1, keepdims=True)              # (S, B, 1)
    e_sum = jnp.sum(e, axis=0, keepdims=True)                         # (1, B, 1)
    ref = (e / e_sum) * edges                                         # (S, B, F)

    assert out.shape == (S, B, F)
    # The algebraic fold reorders f32 accumulation and e_sum is a signed (non-softmax)
    # sum that can amplify rounding when small, so tolerance is mildly relaxed.
    assert jnp.allclose(out, ref, atol=1e-3, rtol=1e-3), "mismatch vs reference"

    print("KERNEL_OK")
</pallas_src>

<mosaic_0001>
module attributes {stable_mosaic.version = 11 : i64} {
  func.func @att_kernel(%arg0: i32, %arg1: memref<2x32xf32, #tpu.memory_space<vmem>>, %arg2: memref<8x2x32xf32, #tpu.memory_space<vmem>>, %arg3: memref<32x32xf32, #tpu.memory_space<vmem>>, %arg4: memref<32x32xf32, #tpu.memory_space<vmem>>, %arg5: memref<1x32xf32, #tpu.memory_space<vmem>>, %arg6: memref<8x2x32xf32, #tpu.memory_space<vmem>>) attributes {dimension_semantics = [#tpu.dimension_semantics<arbitrary>], iteration_bounds = array<i64: 1>, scalar_prefetch = 0 : i64, scratch_operands = 0 : i64, tpu.core_type = #tpu.core_type<tc>, window_params = [{pipeline_mode = #tpu.pipeline_mode<synchronous>, transform_indices = @transform_0, window_bounds = array<i64: 2, 32>}, {pipeline_mode = #tpu.pipeline_mode<synchronous>, transform_indices = @transform_1, window_bounds = array<i64: 8, 2, 32>}, {pipeline_mode = #tpu.pipeline_mode<synchronous>, transform_indices = @transform_2, window_bounds = array<i64: 32, 32>}, {pipeline_mode = #tpu.pipeline_mode<synchronous>, transform_indices = @transform_3, window_bounds = array<i64: 32, 32>}, {pipeline_mode = #tpu.pipeline_mode<synchronous>, transform_indices = @transform_4, window_bounds = array<i64: 1, 32>}, {pipeline_mode = #tpu.pipeline_mode<synchronous>, transform_indices = @transform_5, window_bounds = array<i64: 8, 2, 32>}]} {
    %c0 = arith.constant 0 : index
    %c0_0 = arith.constant 0 : index
    %0 = vector.load %arg1[%c0, %c0_0] : memref<2x32xf32, #tpu.memory_space<vmem>>, vector<2x32xf32>
    %c0_1 = arith.constant 0 : index
    %c0_2 = arith.constant 0 : index
    %c0_3 = arith.constant 0 : index
    %1 = vector.load %arg2[%c0_1, %c0_2, %c0_3] : memref<8x2x32xf32, #tpu.memory_space<vmem>>, vector<8x2x32xf32>
    %c0_4 = arith.constant 0 : index
    %c0_5 = arith.constant 0 : index
    %2 = vector.load %arg3[%c0_4, %c0_5] : memref<32x32xf32, #tpu.memory_space<vmem>>, vector<32x32xf32>
    %c0_6 = arith.constant 0 : index
    %c0_7 = arith.constant 0 : index
    %3 = vector.load %arg4[%c0_6, %c0_7] : memref<32x32xf32, #tpu.memory_space<vmem>>, vector<32x32xf32>
    %c0_8 = arith.constant 0 : index
    %c0_9 = arith.constant 0 : index
    %4 = vector.load %arg5[%c0_8, %c0_9] : memref<1x32xf32, #tpu.memory_space<vmem>>, vector<1x32xf32>
    %cst = arith.constant dense<0.000000e+00> : vector<2x32xf32>
    %5 = tpu.matmul %0, %2, %cst {dimension_numbers = #tpu.dot_dimension_numbers<[1], [0], [0], [1], [0, 0, 1, 1], [], []>} : vector<2x32xf32>, vector<32x32xf32>, vector<2x32xf32> -> vector<2x32xf32>
    %6 = vector.broadcast %4 : vector<1x32xf32> to vector<2x32xf32>
    %7 = arith.addf %5, %6 : vector<2x32xf32>
    %cst_10 = arith.constant dense<0.000000e+00> : vector<2x32xf32>
    %8 = tpu.matmul %7, %3, %cst_10 {dimension_numbers = #tpu.dot_dimension_numbers<[1], [0], [0], [1], [0, 0, 1, 1], [], []>} : vector<2x32xf32>, vector<32x32xf32>, vector<2x32xf32> -> vector<2x32xf32>
    %9 = vector.broadcast %4 : vector<1x32xf32> to vector<2x32xf32>
    %10 = arith.mulf %7, %9 : vector<2x32xf32>
    %cst_11 = arith.constant dense<0.000000e+00> : vector<2xf32>
    %11 = vector.multi_reduction <add>, %10, %cst_11 [1] : vector<2x32xf32> to vector<2xf32>
    %12 = vector.shape_cast %11 : vector<2xf32> to vector<2x1xf32>
    %13 = vector.shape_cast %8 : vector<2x32xf32> to vector<1x2x32xf32>
    %14 = vector.broadcast %13 : vector<1x2x32xf32> to vector<8x2x32xf32>
    %15 = arith.mulf %1, %14 : vector<8x2x32xf32>
    %cst_12 = arith.constant dense<0.000000e+00> : vector<8x2xf32>
    %16 = vector.multi_reduction <add>, %15, %cst_12 [2] : vector<8x2x32xf32> to vector<8x2xf32>
    %17 = vector.shape_cast %16 : vector<8x2xf32> to vector<8x2x1xf32>
    %18 = vector.shape_cast %12 : vector<2x1xf32> to vector<1x2x1xf32>
    %19 = vector.broadcast %18 : vector<1x2x1xf32> to vector<8x2x1xf32>
    %20 = arith.addf %17, %19 : vector<8x2x1xf32>
    %cst_13 = arith.constant dense<0.000000e+00> : vector<2x1xf32>
    %21 = vector.multi_reduction <add>, %20, %cst_13 [0] : vector<8x2x1xf32> to vector<2x1xf32>
    %22 = vector.shape_cast %21 : vector<2x1xf32> to vector<1x2x1xf32>
    %23 = tpu.reciprocal %22 : vector<1x2x1xf32> -> vector<1x2x1xf32>
    %24 = vector.broadcast %23 : vector<1x2x1xf32> to vector<8x2x1xf32>
    %25 = arith.mulf %20, %24 : vector<8x2x1xf32>
    %26 = vector.broadcast %25 : vector<8x2x1xf32> to vector<8x2x32xf32>
    %27 = arith.mulf %26, %1 : vector<8x2x32xf32>
    %c0_14 = arith.constant 0 : index
    %c0_15 = arith.constant 0 : index
    %c0_16 = arith.constant 0 : index
    %28 = vector.load %arg6[%c0_14, %c0_15, %c0_16] : memref<8x2x32xf32, #tpu.memory_space<vmem>>, vector<8x2x32xf32>
    tpu.vector_store %arg6[%c0_14, %c0_15, %c0_16], %27 {strides = array<i32>} : memref<8x2x32xf32, #tpu.memory_space<vmem>>, vector<8x2x32xf32>,
    return
  }
  func.func @transform_0(%arg0: i32) -> (i32, i32) {
    %c0_i32 = arith.constant 0 : i32
    %c0_i32_0 = arith.constant 0 : i32
    %c0_i32_1 = arith.constant 0 : i32
    return %c0_i32, %c0_i32_0 : i32, i32
  }
  func.func @transform_1(%arg0: i32) -> (i32, i32, i32) {
    %c0_i32 = arith.constant 0 : i32
    %c0_i32_0 = arith.constant 0 : i32
    %c0_i32_1 = arith.constant 0 : i32
    %c0_i32_2 = arith.constant 0 : i32
    return %c0_i32, %c0_i32_0, %c0_i32_1 : i32, i32, i32
  }
  func.func @transform_2(%arg0: i32) -> (i32, i32) {
    %c0_i32 = arith.constant 0 : i32
    %c0_i32_0 = arith.constant 0 : i32
    %c0_i32_1 = arith.constant 0 : i32
    return %c0_i32, %c0_i32_0 : i32, i32
  }
  func.func @transform_3(%arg0: i32) -> (i32, i32) {
    %c0_i32 = arith.constant 0 : i32
    %c0_i32_0 = arith.constant 0 : i32
    %c0_i32_1 = arith.constant 0 : i32
    return %c0_i32, %c0_i32_0 : i32, i32
  }
  func.func @transform_4(%arg0: i32) -> (i32, i32) {
    %c0_i32 = arith.constant 0 : i32
    %c0_i32_0 = arith.constant 0 : i32
    %c0_i32_1 = arith.constant 0 : i32
    return %c0_i32, %c0_i32_0 : i32, i32
  }
  func.func @transform_5(%arg0: i32) -> (i32, i32, i32) {
    %c0_i32 = arith.constant 0 : i32
    %c0_i32_0 = arith.constant 0 : i32
    %c0_i32_1 = arith.constant 0 : i32
    %c0_i32_2 = arith.constant 0 : i32
    return %c0_i32, %c0_i32_0, %c0_i32_1 : i32, i32, i32
  }
}

</mosaic_0001>

<llo_original>
// kernel: tpu_custom_call.1
$region0: #{tpu_custom_call.1}
  #allocation0 [shape = 'u32[]', space=smem, size = 0x4, offset = 0x4, fixed_abs, tag = 'smem constant byte address 0x4 - core index']
  #allocation1 [shape = 'u32[144,128]{1,0:T(1,128)}', space=vmem, size = 0x12000, scoped, tag = 'internal scratch']
  %s0 = inlined_call_operand.hbm [shape: f32[2,32], index: 0, kind: input, shape index: {}]
  %s1 = inlined_call_operand.hbm [shape: f32[8,2,32], index: 1, kind: input, shape index: {}]
  %s2 = inlined_call_operand.hbm [shape: f32[32,32], index: 2, kind: input, shape index: {}]
  %s3 = inlined_call_operand.hbm [shape: f32[32,32], index: 3, kind: input, shape index: {}]
  %s4 = inlined_call_operand.vmem [shape: f32[1,32], index: 4, kind: input, shape index: {}]
  %s5 = inlined_call_operand.hbm [shape: f32[8,2,32], index: 5, kind: output, shape index: {}]
  %s6 = sld [smem:[#allocation0]]
  $region46: #{tpu_custom_call.1} parent=0
    _
  %s8 = ssub.s32 1, %s6
  %s9 = scalar_select 0, %s8, %s6
  $region1: #{tpu_custom_call.1} parent=0
    #allocation2 [shape = 'u8[1024]{0}', space=vmem, size = 0x400, scoped, tag = 'input window, operand 0, single buffered']
    #allocation3 [shape = 's32[1]{0}', space=sflag, size = 0x4, scoped, tag = 'scoped memory for tpu_custom_call.1']
    #allocation4 [shape = 's32[1]{0}', space=sflag, size = 0x4, scoped, tag = 'scoped memory for tpu_custom_call.1']
    #allocation5 [shape = 'u8[8192]{0}', space=vmem, size = 0x2000, scoped, tag = 'input window, operand 1, single buffered']
    #allocation6 [shape = 's32[1]{0}', space=sflag, size = 0x4, scoped, tag = 'scoped memory for tpu_custom_call.1']
    #allocation7 [shape = 'u8[16384]{0}', space=vmem, size = 0x4000, scoped, tag = 'input window, operand 2, single buffered']
    #allocation8 [shape = 'u8[16384]{0}', space=vmem, size = 0x4000, scoped, tag = 'input window, operand 3, single buffered']
    #allocation9 [shape = 's32[1]{0}', space=sflag, size = 0x4, scoped, tag = 'scoped memory for tpu_custom_call.1']
    #allocation10 [shape = 'u8[8192]{0}', space=vmem, size = 0x2000, scoped, tag = 'output window, operand 0, single buffered']
    %10 = vsyncpa [#allocation3], 0
    %11 = vsyncpa [#allocation6], 0
    %12 = vsyncpa [#allocation9], 0
    %13 = vsyncpa [#allocation4], 0
    // Predicated region
    $region2: #{tpu_custom_call.1} parent=1 // pred_check
      _
    $region3: #{tpu_custom_call.1} parent=1 // pred_check_branch
      %15 = sbr.rel (0) target = $region5
    $region4: #{tpu_custom_call.1} parent=1 // pred_region
      %s17 = ssub.s32 32, 32
      %18 = vsyncadd [#allocation3], %s17
      %s20 = sshll.u32 [#allocation2], 4
      %s21 = int_to_ptr.vmem [resolvable:$true] %s20
      %23 = dma.hbm_to_vmem [thread:$0]  %s0, 32, %s21, [#allocation3]
    $region5: #{tpu_custom_call.1} parent=1 // pred_fallthru
      _
    // Predicated region
    $region6: #{tpu_custom_call.1} parent=1 // pred_check
      _
    $region7: #{tpu_custom_call.1} parent=1 // pred_check_branch
      %25 = sbr.rel (0) target = $region9
    $region8: #{tpu_custom_call.1} parent=1 // pred_region
      %s27 = ssub.s32 256, 256
      %28 = vsyncadd [#allocation6], %s27
      %s29 = sshll.u32 [#allocation5], 4
      %s30 = int_to_ptr.vmem [resolvable:$true] %s29
      %35 = dma.hbm_to_vmem [thread:$0]  %s1, 256, %s30, [#allocation6], 32, 32, 2
    $region9: #{tpu_custom_call.1} parent=1 // pred_fallthru
      _
    // Predicated region
    $region10: #{tpu_custom_call.1} parent=1 // pred_check
      _
    $region11: #{tpu_custom_call.1} parent=1 // pred_check_branch
      %37 = sbr.rel (0) target = $region13
    $region12: #{tpu_custom_call.1} parent=1 // pred_region
      %s39 = ssub.s32 512, 512
      %40 = vsyncadd [#allocation6], %s39
      %s41 = sshll.u32 [#allocation7], 4
      %s42 = int_to_ptr.vmem [resolvable:$true] %s41
      %47 = dma.hbm_to_vmem [thread:$0]  %s2, 512, %s42, [#allocation6], 128, 128, 8
    $region13: #{tpu_custom_call.1} parent=1 // pred_fallthru
      _
    // Predicated region
    $region14: #{tpu_custom_call.1} parent=1 // pred_check
      _
    $region15: #{tpu_custom_call.1} parent=1 // pred_check_branch
      %49 = sbr.rel (0) target = $region17
    $region16: #{tpu_custom_call.1} parent=1 // pred_region
      %s51 = ssub.s32 512, 512
      %52 = vsyncadd [#allocation9], %s51
      %s53 = sshll.u32 [#allocation8], 4
      %s54 = int_to_ptr.vmem [resolvable:$true] %s53
      %59 = dma.hbm_to_vmem [thread:$0]  %s3, 512, %s54, [#allocation9], 128, 128, 8
    $region17: #{tpu_custom_call.1} parent=1 // pred_fallthru
      _
    // Predicated region
    $region18: #{tpu_custom_call.1} parent=1 // pred_check
      _
    $region19: #{tpu_custom_call.1} parent=1 // pred_check_branch
      %61 = sbr.rel (0) target = $region21
    $region20: #{tpu_custom_call.1} parent=1 // pred_region
      _
    $region21: #{tpu_custom_call.1} parent=1 // pred_fallthru
      _
    // Predicated region
    $region22: #{tpu_custom_call.1} parent=1 // pred_check
      _
    $region23: #{tpu_custom_call.1} parent=1 // pred_check_branch
      %63 = sbr.rel (0) target = $region25
    $region24: #{tpu_custom_call.1} parent=1 // pred_region
      %64 = dma.done [#allocation3], 32
    $region25: #{tpu_custom_call.1} parent=1 // pred_fallthru
      _
    // Predicated region
    $region26: #{tpu_custom_call.1} parent=1 // pred_check
      _
    $region27: #{tpu_custom_call.1} parent=1 // pred_check_branch
      %66 = sbr.rel (0) target = $region29
    $region28: #{tpu_custom_call.1} parent=1 // pred_region
      %67 = dma.done [#allocation6], 256
    $region29: #{tpu_custom_call.1} parent=1 // pred_fallthru
      _
    // Predicated region
    $region30: #{tpu_custom_call.1} parent=1 // pred_check
      _
    $region31: #{tpu_custom_call.1} parent=1 // pred_check_branch
      %69 = sbr.rel (0) target = $region33
    $region32: #{tpu_custom_call.1} parent=1 // pred_region
      %70 = dma.done [#allocation6], 512
    $region33: #{tpu_custom_call.1} parent=1 // pred_fallthru
      _
    // Predicated region
    $region34: #{tpu_custom_call.1} parent=1 // pred_check
      _
    $region35: #{tpu_custom_call.1} parent=1 // pred_check_branch
      %72 = sbr.rel (0) target = $region37
    $region36: #{tpu_custom_call.1} parent=1 // pred_region
      %73 = dma.done [#allocation9], 512
    $region37: #{tpu_custom_call.1} parent=1 // pred_fallthru
      _
    %v74 = vld [vmem:[#allocation2] sm:$0x3]
    %v75 = vld [vmem:[#allocation5] sm:$0x3]
    %v76 = vld [vmem:[#allocation5 + $0x2] sm:$0x3]
    %v77 = vld [vmem:[#allocation5 + $0x4] sm:$0x3]
    %v78 = vld [vmem:[#allocation5 + $0x6] sm:$0x3]
    %v79 = vld [vmem:[#allocation5 + $0x8] sm:$0x3]
    %v80 = vld [vmem:[#allocation5 + $0xa] sm:$0x3]
    %v81 = vld [vmem:[#allocation5 + $0xc] sm:$0x3]
    %v82 = vld [vmem:[#allocation5 + $0xe] sm:$0x3]
    %v83 = vld [vmem:[#allocation7] sm:$0xff]
    %v84 = vld [vmem:[#allocation7 + $0x8] sm:$0xff]
    %v85 = vld [vmem:[#allocation7 + $0x10] sm:$0xff]
    %v86 = vld [vmem:[#allocation7 + $0x18] sm:$0xff]
    %v87 = vld [vmem:[#allocation8] sm:$0xff]
    %v88 = vld [vmem:[#allocation8 + $0x8] sm:$0xff]
    %v89 = vld [vmem:[#allocation8 + $0x10] sm:$0xff]
    %v90 = vld [vmem:[#allocation8 + $0x18] sm:$0xff]
    %v91 = vld [vmem:[%s4] sm:$0x1]
    %v93 = vlaneseq
    %v94 = vshrl.u32 %v93, 7
    %v95 = vsub.s32 0, %v94
    %v96 = vrot.slane %v91, %v95
    %vm98 = vcmask 261120
    %v100 = vsel %vm98, %v74, 0
    %102 = vmatprep.subr.mxu0 0.0
    %103 = vmatpush1.msra.mxu0 %v83
    %104 = vmatprep.subr.mxu0 0.0
    %105 = vmatpush1.msra.mxu0 %v84
    %106 = vmatprep.subr.mxu0 0.0
    %107 = vmatpush1.msra.mxu0 %v85
    %108 = vmatprep.subr.mxu0 0.0
    %109 = vmatpush1.msra.mxu0 %v86
    %110 = vmatprep.subr.mxu0 0.0
    %111 = vmatpush1.msra.mxu0 0.0
    %112 = vmatprep.subr.mxu0 0.0
    %113 = vmatpush1.msra.mxu0 0.0
    %114 = vmatprep.subr.mxu0 0.0
    %115 = vmatpush1.msra.mxu0 0.0
    %116 = vmatprep.subr.mxu0 0.0
    %117 = vmatpush1.msra.mxu0 0.0
    %118 = vmatprep.subr.mxu0 0.0
    %119 = vmatpush1.msra.mxu0 0.0
    %120 = vmatprep.subr.mxu0 0.0
    %121 = vmatpush1.msra.mxu0 0.0
    %122 = vmatprep.subr.mxu0 0.0
    %123 = vmatpush1.msra.mxu0 0.0
    %124 = vmatprep.subr.mxu0 0.0
    %125 = vmatpush1.msra.mxu0 0.0
    %126 = vmatprep.subr.mxu0 0.0
    %127 = vmatpush1.msra.mxu0 0.0
    %128 = vmatprep.subr.mxu0 0.0
    %129 = vmatpush1.msra.mxu0 0.0
    %130 = vmatprep.subr.mxu0 0.0
    %131 = vmatpush1.msra.mxu0 0.0
    %132 = vmatprep.subr.mxu0 0.0
    %133 = vmatpush1.msra.mxu0 0.0
    %134 = vmatprep.subr.mxu0 0.0
    %135 = vmatpush1.msra.mxu0 0.0
    %136 = vmatprep.subr.mxu0 0.0
    %137 = vmatpush1.msra.mxu0 0.0
    %138 = vmatprep.subr.mxu0 0.0
    %139 = vmatpush1.msra.mxu0 0.0
    %140 = vmatprep.subr.mxu0 0.0
    %141 = vmatpush1.msra.mxu0 0.0
    %142 = vmatprep.subr.mxu0 0.0
    %143 = vmatpush1.msra.mxu0 0.0
    %144 = vmatprep.subr.mxu0 0.0
    %145 = vmatpush1.msra.mxu0 0.0
    %146 = vmatprep.subr.mxu0 0.0
    %147 = vmatpush1.msra.mxu0 0.0
    %148 = vmatprep.subr.mxu0 0.0
    %149 = vmatpush1.msra.mxu0 0.0
    %150 = vmatprep.subr.mxu0 0.0
    %151 = vmatpush1.msra.mxu0 0.0
    %152 = vmatprep.subr.mxu0 0.0
    %153 = vmatpush1.msra.mxu0 0.0
    %154 = vmatprep.subr.mxu0 0.0
    %155 = vmatpush1.msra.mxu0 0.0
    %156 = vmatprep.subr.mxu0 0.0
    %157 = vmatpush1.msra.mxu0 0.0
    %158 = vmatprep.subr.mxu0 0.0
    %159 = vmatpush1.msra.mxu0 0.0
    %160 = vmatprep.subr.mxu0 0.0
    %161 = vmatpush1.msra.mxu0 0.0
    %162 = vmatprep.subr.mxu0 0.0
    %163 = vmatpush1.msra.mxu0 0.0
    %164 = vmatprep.subr.mxu0 0.0
    %165 = vmatpush1.msra.mxu0 0.0
    %166 = vmatprep.mubr.f32.mxu0 0.0
    %167 = vmatmul.mubr.f32.gmra.mrb[0].mxu0 %v100
    %v168 = vpop.f32.mrb[0].mxu0
    %v169 = vadd.f32 %v96, %v168
    %v170 = vpop.f32.mrb[0].mxu0
    %171 = vdwg.mxu0
    %v173 = vsel %vm98, %v169, 0
    %175 = vmatprep.subr.mxu0 0.0
    %176 = vmatpush1.msra.mxu0 %v87
    %177 = vmatprep.subr.mxu0 0.0
    %178 = vmatpush1.msra.mxu0 %v88
    %179 = vmatprep.subr.mxu0 0.0
    %180 = vmatpush1.msra.mxu0 %v89
    %181 = vmatprep.subr.mxu0 0.0
    %182 = vmatpush1.msra.mxu0 %v90
    %183 = vmatprep.subr.mxu0 0.0
    %184 = vmatpush1.msra.mxu0 0.0
    %185 = vmatprep.subr.mxu0 0.0
    %186 = vmatpush1.msra.mxu0 0.0
    %187 = vmatprep.subr.mxu0 0.0
    %188 = vmatpush1.msra.mxu0 0.0
    %189 = vmatprep.subr.mxu0 0.0
    %190 = vmatpush1.msra.mxu0 0.0
    %191 = vmatprep.subr.mxu0 0.0
    %192 = vmatpush1.msra.mxu0 0.0
    %193 = vmatprep.subr.mxu0 0.0
    %194 = vmatpush1.msra.mxu0 0.0
    %195 = vmatprep.subr.mxu0 0.0
    %196 = vmatpush1.msra.mxu0 0.0
    %197 = vmatprep.subr.mxu0 0.0
    %198 = vmatpush1.msra.mxu0 0.0
    %199 = vmatprep.subr.mxu0 0.0
    %200 = vmatpush1.msra.mxu0 0.0
    %201 = vmatprep.subr.mxu0 0.0
    %202 = vmatpush1.msra.mxu0 0.0
    %203 = vmatprep.subr.mxu0 0.0
    %204 = vmatpush1.msra.mxu0 0.0
    %205 = vmatprep.subr.mxu0 0.0
    %206 = vmatpush1.msra.mxu0 0.0
    %207 = vmatprep.subr.mxu0 0.0
    %208 = vmatpush1.msra.mxu0 0.0
    %209 = vmatprep.subr.mxu0 0.0
    %210 = vmatpush1.msra.mxu0 0.0
    %211 = vmatprep.subr.mxu0 0.0
    %212 = vmatpush1.msra.mxu0 0.0
    %213 = vmatprep.subr.mxu0 0.0
    %214 = vmatpush1.msra.mxu0 0.0
    %215 = vmatprep.subr.mxu0 0.0
    %216 = vmatpush1.msra.mxu0 0.0
    %217 = vmatprep.subr.mxu0 0.0
    %218 = vmatpush1.msra.mxu0 0.0
    %219 = vmatprep.subr.mxu0 0.0
    %220 = vmatpush1.msra.mxu0 0.0
    %221 = vmatprep.subr.mxu0 0.0
    %222 = vmatpush1.msra.mxu0 0.0
    %223 = vmatprep.subr.mxu0 0.0
    %224 = vmatpush1.msra.mxu0 0.0
    %225 = vmatprep.subr.mxu0 0.0
    %226 = vmatpush1.msra.mxu0 0.0
    %227 = vmatprep.subr.mxu0 0.0
    %228 = vmatpush1.msra.mxu0 0.0
    %229 = vmatprep.subr.mxu0 0.0
    %230 = vmatpush1.msra.mxu0 0.0
    %231 = vmatprep.subr.mxu0 0.0
    %232 = vmatpush1.msra.mxu0 0.0
    %233 = vmatprep.subr.mxu0 0.0
    %234 = vmatpush1.msra.mxu0 0.0
    %235 = vmatprep.subr.mxu0 0.0
    %236 = vmatpush1.msra.mxu0 0.0
    %237 = vmatprep.subr.mxu0 0.0
    %238 = vmatpush1.msra.mxu0 0.0
    %239 = vmatprep.mubr.f32.mxu0 0.0
    %240 = vmatmul.mubr.f32.gmra.mrb[0].mxu0 %v173
    %v241 = vpop.f32.mrb[0].mxu0
    %v242 = vadd.f32 0.0, %v241
    %v243 = vpop.f32.mrb[0].mxu0
    %244 = vdwg.mxu0
    %v245 = vmul.f32 %v169, %v96
    %vm246 = vcmask 254976
    %v247 = vsel %vm246, %v245, 0.0
    %248 = vadd.xlane.f32.xlu0 %v247
    %v249 = vpop.xlane.xlu0 %248
    %v250 = vmul.f32 %v75, %v242
    %v251 = vmul.f32 %v76, %v242
    %v252 = vmul.f32 %v77, %v242
    %v253 = vmul.f32 %v78, %v242
    %v254 = vmul.f32 %v79, %v242
    %v255 = vmul.f32 %v80, %v242
    %v256 = vmul.f32 %v81, %v242
    %v257 = vmul.f32 %v82, %v242
    %v258 = vsel %vm246, %v250, 0.0
    %259 = vadd.xlane.f32.xlu0 %v258
    %v260 = vpop.xlane.xlu0 %259
    %v261 = vsel %vm246, %v251, 0.0
    %262 = vadd.xlane.f32.xlu0 %v261
    %v263 = vpop.xlane.xlu0 %262
    %v264 = vsel %vm246, %v252, 0.0
    %265 = vadd.xlane.f32.xlu0 %v264
    %v266 = vpop.xlane.xlu0 %265
    %v267 = vsel %vm246, %v253, 0.0
    %268 = vadd.xlane.f32.xlu0 %v267
    %v269 = vpop.xlane.xlu0 %268
    %v270 = vsel %vm246, %v254, 0.0
    %271 = vadd.xlane.f32.xlu0 %v270
    %v272 = vpop.xlane.xlu0 %271
    %v273 = vsel %vm246, %v255, 0.0
    %274 = vadd.xlane.f32.xlu0 %v273
    %v275 = vpop.xlane.xlu0 %274
    %v276 = vsel %vm246, %v256, 0.0
    %277 = vadd.xlane.f32.xlu0 %v276
    %v278 = vpop.xlane.xlu0 %277
    %v279 = vsel %vm246, %v257, 0.0
    %280 = vadd.xlane.f32.xlu0 %v279
    %v281 = vpop.xlane.xlu0 %280
    %v282 = vadd.f32 %v260, %v249
    %v283 = vadd.f32 %v263, %v249
    %v284 = vadd.f32 %v266, %v249
    %v285 = vadd.f32 %v269, %v249
    %v286 = vadd.f32 %v272, %v249
    %v287 = vadd.f32 %v275, %v249
    %v288 = vadd.f32 %v278, %v249
    %v289 = vadd.f32 %v281, %v249
    %vm290 = vcmask 1041408
    %v291 = vsel %vm290, %v282, 0.0
    %v292 = vsel %vm290, %v283, 0.0
    %v293 = vadd.f32 %v291, %v292
    %v294 = vsel %vm290, %v284, 0.0
    %v295 = vadd.f32 %v293, %v294
    %v296 = vsel %vm290, %v285, 0.0
    %v297 = vadd.f32 %v295, %v296
    %v298 = vsel %vm290, %v286, 0.0
    %v299 = vadd.f32 %v297, %v298
    %v300 = vsel %vm290, %v287, 0.0
    %v301 = vadd.f32 %v299, %v300
    %v302 = vsel %vm290, %v288, 0.0
    %v303 = vadd.f32 %v301, %v302
    %v304 = vsel %vm290, %v289, 0.0
    %v305 = vadd.f32 %v303, %v304
    %v306 = vrcp.pop %v305
    %v307 = vmul.f32 %v282, %v306
    %v308 = vmul.f32 %v283, %v306
    %v309 = vmul.f32 %v284, %v306
    %v310 = vmul.f32 %v285, %v306
    %v311 = vmul.f32 %v286, %v306
    %v312 = vmul.f32 %v287, %v306
    %v313 = vmul.f32 %v288, %v306
    %v314 = vmul.f32 %v289, %v306
    %v315 = vmul.f32 %v307, %v75
    %v316 = vmul.f32 %v308, %v76
    %v317 = vmul.f32 %v309, %v77
    %v318 = vmul.f32 %v310, %v78
    %v319 = vmul.f32 %v311, %v79
    %v320 = vmul.f32 %v312, %v80
    %v321 = vmul.f32 %v313, %v81
    %v322 = vmul.f32 %v314, %v82
    %323 = vst.msk [vmem:[#allocation10] sm:$0x3] %vm246, %v315
    %324 = vst.msk [vmem:[#allocation10 + $0x2] sm:$0x3] %vm246, %v316
    %325 = vst.msk [vmem:[#allocation10 + $0x4] sm:$0x3] %vm246, %v317
    %326 = vst.msk [vmem:[#allocation10 + $0x6] sm:$0x3] %vm246, %v318
    %327 = vst.msk [vmem:[#allocation10 + $0x8] sm:$0x3] %vm246, %v319
    %328 = vst.msk [vmem:[#allocation10 + $0xa] sm:$0x3] %vm246, %v320
    %329 = vst.msk [vmem:[#allocation10 + $0xc] sm:$0x3] %vm246, %v321
    %330 = vst.msk [vmem:[#allocation10 + $0xe] sm:$0x3] %vm246, %v322
    // Predicated region
    $region38: #{tpu_custom_call.1} parent=1 // pred_check
      _
    $region39: #{tpu_custom_call.1} parent=1 // pred_check_branch
      %332 = sbr.rel (0) target = $region41
    $region40: #{tpu_custom_call.1} parent=1 // pred_region
      %s334 = ssub.s32 256, 256
      %335 = vsyncadd [#allocation4], %s334
      %s336 = sshll.u32 [#allocation10], 4
      %s337 = int_to_ptr.vmem [resolvable:$true] %s336
      %342 = dma.vmem_to_hbm [thread:$0]  %s337, 256, %s5, [#allocation4], 32, 32, 2
    $region41: #{tpu_custom_call.1} parent=1 // pred_fallthru
      _
    // Predicated region
    $region42: #{tpu_custom_call.1} parent=1 // pred_check
      _
    $region43: #{tpu_custom_call.1} parent=1 // pred_check_branch
      %344 = sbr.rel (0) target = $region45
    $region44: #{tpu_custom_call.1} parent=1 // pred_region
      %345 = dma.done [#allocation4], 256
    $region45: #{tpu_custom_call.1} parent=1 // pred_fallthru
      _
    %346 = vsyncpa [#allocation3], 1
    %347 = vsyncpa [#allocation6], 1
    %348 = vsyncpa [#allocation9], 1
    %349 = vsyncpa [#allocation4], 1

</llo_original>
